<compile_context>
chip_gen: v6e
topology: v6e:2x2x1
jax: 0.10.0
libtpu: 0.0.40
codegen_flags: <defaults>
</compile_context>

<pallas_src>
import jax
import jax.numpy as jnp
from jax import lax
from jax.experimental import pallas as pl
from jax.experimental.pallas import tpu as pltpu


# ----------------------- fused layer layout (static) -----------------------
# (fan_in, fan_out) per fused layer; fan_in counts appended const-1 lanes,
# fan_out counts the trailing const-1 output column (bias lane for next layer).
_FUSED_DIMS = [
    (13, 25),   # L0: [fc1.W; fc1.b]                       in: x(12)+1   out: 24+1
    (25, 11),   # L1: [fc2_binary | fc2_coords]            in: 24+1      out: 10+1
    (11, 33),   # L2: fc3                                  in: 10+1      out: 32+1
    (33, 29),   # L3: [fc4_binary | fc4_idx' | fc4_coords] in: 32+1      out: 28+1
    (40, 33),   # L4: fc5 (rows permuted/pair-summed)      in: 11+29     out: 32+1
    (33, 10),   # L5: [fc6_indices | fc6_coords]           in: 32+1      out: 10
]
_SLAB_COLS = 40                                  # >= max fan_out (33)


def _round_up(v, m):
    return (v + m - 1) // m * m


_ROW_OFFSETS = []
_r = 0
for _fin, _fout in _FUSED_DIMS:
    _ROW_OFFSETS.append(_r)
    _r += _round_up(_fin, 16)                    # bf16 sublane-tile aligned blocks
_SLAB_ROWS = _r                                  # 208


# ----------------------------- kernel helpers -----------------------------

def _layer(p_ref, x, idx):
    """y = x @ [W; b]  (bias folded; const-1 lane already present in x).
    bf16 x bf16 -> f32 accumulate on the MXU."""
    fin, fout = _FUSED_DIMS[idx]
    r = _ROW_OFFSETS[idx]
    w = p_ref[r:r + fin, 0:fout]                                 # (fin, fout) bf16
    return jnp.dot(x.astype(jnp.bfloat16), w,
                   preferred_element_type=jnp.float32)


def _top2_from_candidates(cands):
    """Per-lane top-2 candidate indices (ascending) over a list of same-shaped
    float arrays; cands[j][:, g] is candidate j's value for group g.
    Pure elementwise VPU work -- no cross-lane reductions."""
    n = len(cands)
    m1 = cands[0]
    for c in cands[1:]:
        m1 = jnp.maximum(m1, c)
    i1 = jnp.full(cands[0].shape, n, jnp.int32)
    for j in reversed(range(n)):                  # lowest index wins ties
        i1 = jnp.where(cands[j] >= m1, jnp.int32(j), i1)
    masked = [jnp.where(i1 == j, -jnp.inf, cands[j]) for j in range(n)]
    m2 = masked[0]
    for c in masked[1:]:
        m2 = jnp.maximum(m2, c)
    i2 = jnp.full(cands[0].shape, n, jnp.int32)
    for j in reversed(range(n)):
        i2 = jnp.where(masked[j] >= m2, jnp.int32(j), i2)
    return jnp.minimum(i1, i2), jnp.maximum(i1, i2)


def _top2_sorted_idx(vals, L):
    """Indices of the top-2 values along axis 1, ascending (== topk + sort)."""
    idx = lax.broadcasted_iota(jnp.int32, vals.shape, 1)
    m1 = jnp.max(vals, axis=1, keepdims=True)
    i1 = jnp.min(jnp.where(vals >= m1, idx, jnp.int32(L)), axis=1, keepdims=True)
    masked = jnp.where(idx == i1, -jnp.inf, vals)
    m2 = jnp.max(masked, axis=1, keepdims=True)
    i2 = jnp.min(jnp.where(masked >= m2, idx, jnp.int32(L)), axis=1, keepdims=True)
    return jnp.concatenate([jnp.minimum(i1, i2), jnp.maximum(i1, i2)], axis=1)


# --------------------------------- kernel ----------------------------------

def combined_kernel(x_ref, p_ref, out_ref):
    # The module returns only the [0] row of every output: compute on row 0.
    x = x_ref[0:1, :]                                            # (1, 12) f32
    one = jnp.ones((1, 1), jnp.float32)
    a0 = jnp.concatenate([x, one], axis=1)                       # (1, 13), lane 12 == 1

    # --- stage 1: fc1 -> relu -> fused [fc2_binary | fc2_coords] ---
    x1 = jnp.maximum(_layer(p_ref, a0, 0), 0.0)                  # (1, 25), lane 24 == 1
    h2 = _layer(p_ref, x1, 1)                                    # (1, 11), lane 10 == 1
    # round(sigmoid(z)) == (z > 0)  (round-half-to-even sends 0.5 -> 0)
    lane11 = lax.broadcasted_iota(jnp.int32, (1, 11), 1)
    x2_in = jnp.where(lane11 < 2, jnp.where(h2 > 0.0, 1.0, 0.0), h2)
    out1_binary = x2_in[:, 0:2]                                  # (1, 2)
    out1_coords = h2[:, 2:10]                                    # (1, 8)

    # --- stage 2: fc3 -> relu -> fused [fc4_binary | fc4_idx' | fc4_coords] ---
    x2 = jnp.maximum(_layer(p_ref, x2_in, 2), 0.0)               # (1, 33), lane 32 == 1
    h4 = _layer(p_ref, x2, 3)                                    # (1, 29), lane 28 == 1
    lane29 = lax.broadcasted_iota(jnp.int32, (1, 29), 1)
    h4_bin = jnp.where(lane29 < 4, jnp.where(h4 > 0.0, 1.0, 0.0), h4)
    out2_binary = h4_bin[:, 0:4]                                 # (1, 4)
    out2_coords = h4[:, 20:28]                                   # (1, 8)
    # fc4_indices columns permuted offline: candidate j of group g sits at lane
    # 4 + 4*j + g, so the per-group top-2 is elementwise over 4 slices.
    cands = [h4[:, 4 + 4 * j:8 + 4 * j] for j in range(4)]       # 4 x (1, 4)
    adj2_lo, adj2_hi = _top2_from_candidates(cands)              # (1, 4) int32 each

    # --- stage 3: fc5 (repeat_interleave folded into its rows offline) ---
    x3_aug = jnp.concatenate([x2_in, h4_bin], axis=1)            # (1, 40)
    x3 = jnp.maximum(_layer(p_ref, x3_aug, 4), 0.0)              # (1, 33), lane 32 == 1
    h6 = _layer(p_ref, x3, 5)                                    # (1, 10)
    adj3 = _top2_sorted_idx(h6[:, 0:8], 8)                       # (1, 2) int32
    c3 = h6[:, 8:10]                                             # (1, 2)

    # --- packed writeback: ONE (1, 36) f32 store / output DMA ---
    # repeat_interleave(2) on out1_binary for the returned final_binary only.
    lane4 = lax.broadcasted_iota(jnp.int32, (1, 4), 1)
    stretched = jnp.where(lane4 < 2, out1_binary[:, 0:1], out1_binary[:, 1:2])
    out_ref[...] = jnp.concatenate(
        [stretched, out2_binary,                                 # final_binary (8)
         out1_coords, out2_coords,                               # coords       (16)
         c3,                                                     # out3_coords  (2)
         adj2_lo.astype(jnp.float32), adj2_hi.astype(jnp.float32),  # adj2      (8)
         adj3.astype(jnp.float32)],                              # adj3         (2)
        axis=1)


# --------------------------------- wrapper ---------------------------------

def make_params(key):
    """Deterministic PyTorch-style init, U(-1/sqrt(fan_in), 1/sqrt(fan_in)).
    Weights stored (in, out) so y = x @ W + b; biases (1, out)."""
    layer_dims = [  # fc1, fc2_binary, fc2_coords, fc3, fc4_binary, fc4_indices,
                    # fc4_coords, fc5, fc6_indices, fc6_coords
        (12, 24), (24, 2), (24, 8),
        (10, 32), (32, 4), (32, 16), (32, 8),
        (24, 32), (32, 8), (32, 2),
    ]
    params = []
    for fin, fout in layer_dims:
        key, kw, kb = jax.random.split(key, 3)
        bound = 1.0 / (fin ** 0.5)
        params.append(jax.random.uniform(kw, (fin, fout), jnp.float32, -bound, bound))
        params.append(jax.random.uniform(kb, (1, fout), jnp.float32, -bound, bound))
    return params


def pack_params(params):
    """Offline weight surgery: fuse sibling linears, fold biases (+ const output
    columns), permute fc4_indices columns, fold repeat_interleave / stage-3
    layout into fc5's rows, pack everything into one (208, 40) bf16 slab."""
    (w1, b1, w2b, b2b, w2c, b2c, w3, b3, w4b, b4b, w4i, b4i,
     w4c, b4c, w5, b5, w6i, b6i, w6c, b6c) = params

    # L0: fc1 -> output lanes [fc1(24), 1]
    W0 = jnp.zeros((13, 25), jnp.float32)
    W0 = W0.at[0:12, 0:24].set(w1).at[12, 0:24].set(b1[0]).at[12, 24].set(1.0)

    # L1: [fc2_binary | fc2_coords] -> output lanes [bin(2), coords(8), 1]
    W1 = jnp.zeros((25, 11), jnp.float32)
    W1 = (W1.at[0:24, 0:2].set(w2b).at[0:24, 2:10].set(w2c)
            .at[24, 0:2].set(b2b[0]).at[24, 2:10].set(b2c[0]).at[24, 10].set(1.0))

    # L2: fc3 -> output lanes [fc3(32), 1]
    W2 = jnp.zeros((11, 33), jnp.float32)
    W2 = W2.at[0:10, 0:32].set(w3).at[10, 0:32].set(b3[0]).at[10, 32].set(1.0)

    # L3: [fc4_binary | fc4_indices(permuted) | fc4_coords] -> [.(28), 1]
    # candidate j of group g -> column 4*j + g (in-kernel top-2 stays elementwise)
    w4i_p = w4i.reshape(32, 4, 4).transpose(0, 2, 1).reshape(32, 16)
    b4i_p = b4i.reshape(4, 4).T.reshape(16)
    W3 = jnp.zeros((33, 29), jnp.float32)
    W3 = (W3.at[0:32, 0:4].set(w4b).at[0:32, 4:20].set(w4i_p).at[0:32, 20:28].set(w4c)
            .at[32, 0:4].set(b4b[0]).at[32, 4:20].set(b4i_p).at[32, 20:28].set(b4c[0])
            .at[32, 28].set(1.0))

    # L4: fc5 consuming [x2_in(11) | h4_bin(29)] directly:
    #   lanes 0-1  out1_binary  -> rows of (stretched) pairs summed
    #   lanes 2-9  out1_coords  -> fc5 rows 8:16
    #   lane 10    const 1      -> unused (zero row)
    #   lanes 11-14 out2_binary -> fc5 rows 4:8
    #   lanes 15-30 idx logits  -> unused (zero rows)
    #   lanes 31-38 out2_coords -> fc5 rows 16:24
    #   lane 39    const 1      -> fc5 bias row (+ const output column)
    W4 = jnp.zeros((40, 33), jnp.float32)
    W4 = (W4.at[0, 0:32].set(w5[0] + w5[1])
            .at[1, 0:32].set(w5[2] + w5[3])
            .at[2:10, 0:32].set(w5[8:16])
            .at[11:15, 0:32].set(w5[4:8])
            .at[31:39, 0:32].set(w5[16:24])
            .at[39, 0:32].set(b5[0])
            .at[39, 32].set(1.0))

    # L5: [fc6_indices | fc6_coords]
    W5 = jnp.zeros((33, 10), jnp.float32)
    W5 = (W5.at[0:32, 0:8].set(w6i).at[0:32, 8:10].set(w6c)
            .at[32, 0:8].set(b6i[0]).at[32, 8:10].set(b6c[0]))

    blocks = [W0, W1, W2, W3, W4, W5]
    slab = jnp.zeros((_SLAB_ROWS, _SLAB_COLS), jnp.float32)
    for (fin, fout), off, wb in zip(_FUSED_DIMS, _ROW_OFFSETS, blocks):
        assert wb.shape == (fin, fout)
        slab = slab.at[off:off + fin, 0:fout].set(wb)
    return slab.astype(jnp.bfloat16)


def combined_network(x, param_slab):
    vmem = pl.BlockSpec(memory_space=pltpu.MemorySpace.VMEM)
    slab = pl.pallas_call(
        combined_kernel,
        out_shape=jax.ShapeDtypeStruct((1, 36), jnp.float32),
        in_specs=[vmem, vmem],
        out_specs=vmem,
    )(x, param_slab)

    # Glue-level unpacking (matches the module's [0]-sliced returns).
    row = slab[0]
    final_binary = row[0:8]                                  # (8,)
    output_coords = row[8:24].reshape(8, 2)                  # (8, 2)
    out3_coords = row[24:26]                                 # (2,)
    adj2_lo = row[26:30].astype(jnp.int32)
    adj2_hi = row[30:34].astype(jnp.int32)
    out2_adjacency = jnp.stack([adj2_lo, adj2_hi], axis=1)   # (4, 2) int32
    out3_adjacency = row[34:36].astype(jnp.int32)            # (2,)  int32
    return final_binary, out2_adjacency, output_coords, out3_adjacency, out3_coords


if __name__ == "__main__":
    key = jax.random.PRNGKey(0)
    key, kx = jax.random.split(key)
    B = 2
    x = jax.random.normal(kx, (B, 12), jnp.float32)   # module flattens input to (B, 12)
    params = make_params(key)
    packed = pack_params(params)

    outs = combined_network(x, packed)
    outs = jax.block_until_ready(outs)

    # light sanity checks on shapes/dtypes
    assert outs[0].shape == (8,)
    assert outs[1].shape == (4, 2) and outs[1].dtype == jnp.int32
    assert outs[2].shape == (8, 2)
    assert outs[3].shape == (2,) and outs[3].dtype == jnp.int32
    assert outs[4].shape == (2,)
    print("KERNEL_OK")
</pallas_src>

<mosaic_0001>
module attributes {stable_mosaic.version = 11 : i64} {
  func.func @combined_kernel(%arg0: memref<2x12xf32, #tpu.memory_space<vmem>>, %arg1: memref<208x40xbf16, #tpu.memory_space<vmem>>, %arg2: memref<1x36xf32, #tpu.memory_space<vmem>>) attributes {dimension_semantics = [], scalar_prefetch = 0 : i64, scratch_operands = 0 : i64, tpu.core_type = #tpu.core_type<tc>} {
    %c0 = arith.constant 0 : index
    %c0_0 = arith.constant 0 : index
    %0 = vector.load %arg0[%c0, %c0_0] : memref<2x12xf32, #tpu.memory_space<vmem>>, vector<1x12xf32>
    %cst = arith.constant 1.000000e+00 : f32
    %1 = vector.broadcast %cst : f32 to vector<1x1xf32>
    %2 = tpu.concatenate %0, %1 in 1 : vector<1x12xf32>, vector<1x1xf32> -> vector<1x13xf32>
    %c0_1 = arith.constant 0 : index
    %c0_2 = arith.constant 0 : index
    %3 = vector.load %arg1[%c0_1, %c0_2] : memref<208x40xbf16, #tpu.memory_space<vmem>>, vector<13x25xbf16>
    %4 = arith.truncf %2 : vector<1x13xf32> to vector<1x13xbf16>
    %cst_3 = arith.constant dense<0.000000e+00> : vector<1x25xf32>
    %5 = tpu.matmul %4, %3, %cst_3 {dimension_numbers = #tpu.dot_dimension_numbers<[1], [0], [0], [1], [0, 0, 1, 1], [], []>} : vector<1x13xbf16>, vector<13x25xbf16>, vector<1x25xf32> -> vector<1x25xf32>
    %cst_4 = arith.constant 0.000000e+00 : f32
    %6 = vector.broadcast %cst_4 : f32 to vector<1x25xf32>
    %7 = arith.maximumf %5, %6 : vector<1x25xf32>
    %c16 = arith.constant 16 : index
    %c0_5 = arith.constant 0 : index
    %8 = vector.load %arg1[%c16, %c0_5] : memref<208x40xbf16, #tpu.memory_space<vmem>>, vector<25x11xbf16>
    %9 = arith.truncf %7 : vector<1x25xf32> to vector<1x25xbf16>
    %cst_6 = arith.constant dense<0.000000e+00> : vector<1x11xf32>
    %10 = tpu.matmul %9, %8, %cst_6 {dimension_numbers = #tpu.dot_dimension_numbers<[1], [0], [0], [1], [0, 0, 1, 1], [], []>} : vector<1x25xbf16>, vector<25x11xbf16>, vector<1x11xf32> -> vector<1x11xf32>
    %11 = tpu.iota {dimensions = array<i32: 1>} : vector<1x11xi32>
    %c2_i32 = arith.constant 2 : i32
    %12 = vector.broadcast %c2_i32 : i32 to vector<1x11xi32>
    %13 = arith.cmpi slt, %11, %12 : vector<1x11xi32>
    %cst_7 = arith.constant 0.000000e+00 : f32
    %14 = vector.broadcast %cst_7 : f32 to vector<1x11xf32>
    %15 = arith.cmpf ogt, %10, %14 : vector<1x11xf32>
    %cst_8 = arith.constant 1.000000e+00 : f32
    %cst_9 = arith.constant 0.000000e+00 : f32
    %16 = vector.broadcast %cst_8 : f32 to vector<1x11xf32>
    %17 = vector.broadcast %cst_9 : f32 to vector<1x11xf32>
    %18 = arith.select %15, %16, %17 : vector<1x11xi1>, vector<1x11xf32>
    %19 = arith.select %13, %18, %10 : vector<1x11xi1>, vector<1x11xf32>
    %20 = vector.extract_strided_slice %19 {offsets = [0, 0], sizes = [1, 2], strides = [1, 1]} : vector<1x11xf32> to vector<1x2xf32>
    %21 = vector.extract_strided_slice %10 {offsets = [0, 2], sizes = [1, 8], strides = [1, 1]} : vector<1x11xf32> to vector<1x8xf32>
    %c48 = arith.constant 48 : index
    %c0_10 = arith.constant 0 : index
    %22 = vector.load %arg1[%c48, %c0_10] : memref<208x40xbf16, #tpu.memory_space<vmem>>, vector<11x33xbf16>
    %23 = arith.truncf %19 : vector<1x11xf32> to vector<1x11xbf16>
    %cst_11 = arith.constant dense<0.000000e+00> : vector<1x33xf32>
    %24 = tpu.matmul %23, %22, %cst_11 {dimension_numbers = #tpu.dot_dimension_numbers<[1], [0], [0], [1], [0, 0, 1, 1], [], []>} : vector<1x11xbf16>, vector<11x33xbf16>, vector<1x33xf32> -> vector<1x33xf32>
    %cst_12 = arith.constant 0.000000e+00 : f32
    %25 = vector.broadcast %cst_12 : f32 to vector<1x33xf32>
    %26 = arith.maximumf %24, %25 : vector<1x33xf32>
    %c64 = arith.constant 64 : index
    %c0_13 = arith.constant 0 : index
    %27 = vector.load %arg1[%c64, %c0_13] : memref<208x40xbf16, #tpu.memory_space<vmem>>, vector<33x29xbf16>
    %28 = arith.truncf %26 : vector<1x33xf32> to vector<1x33xbf16>
    %cst_14 = arith.constant dense<0.000000e+00> : vector<1x29xf32>
    %29 = tpu.matmul %28, %27, %cst_14 {dimension_numbers = #tpu.dot_dimension_numbers<[1], [0], [0], [1], [0, 0, 1, 1], [], []>} : vector<1x33xbf16>, vector<33x29xbf16>, vector<1x29xf32> -> vector<1x29xf32>
    %30 = tpu.iota {dimensions = array<i32: 1>} : vector<1x29xi32>
    %c4_i32 = arith.constant 4 : i32
    %31 = vector.broadcast %c4_i32 : i32 to vector<1x29xi32>
    %32 = arith.cmpi slt, %30, %31 : vector<1x29xi32>
    %cst_15 = arith.constant 0.000000e+00 : f32
    %33 = vector.broadcast %cst_15 : f32 to vector<1x29xf32>
    %34 = arith.cmpf ogt, %29, %33 : vector<1x29xf32>
    %cst_16 = arith.constant 1.000000e+00 : f32
    %cst_17 = arith.constant 0.000000e+00 : f32
    %35 = vector.broadcast %cst_16 : f32 to vector<1x29xf32>
    %36 = vector.broadcast %cst_17 : f32 to vector<1x29xf32>
    %37 = arith.select %34, %35, %36 : vector<1x29xi1>, vector<1x29xf32>
    %38 = arith.select %32, %37, %29 : vector<1x29xi1>, vector<1x29xf32>
    %39 = vector.extract_strided_slice %38 {offsets = [0, 0], sizes = [1, 4], strides = [1, 1]} : vector<1x29xf32> to vector<1x4xf32>
    %40 = vector.extract_strided_slice %29 {offsets = [0, 20], sizes = [1, 8], strides = [1, 1]} : vector<1x29xf32> to vector<1x8xf32>
    %41 = vector.extract_strided_slice %29 {offsets = [0, 4], sizes = [1, 4], strides = [1, 1]} : vector<1x29xf32> to vector<1x4xf32>
    %42 = vector.extract_strided_slice %29 {offsets = [0, 8], sizes = [1, 4], strides = [1, 1]} : vector<1x29xf32> to vector<1x4xf32>
    %43 = vector.extract_strided_slice %29 {offsets = [0, 12], sizes = [1, 4], strides = [1, 1]} : vector<1x29xf32> to vector<1x4xf32>
    %44 = vector.extract_strided_slice %29 {offsets = [0, 16], sizes = [1, 4], strides = [1, 1]} : vector<1x29xf32> to vector<1x4xf32>
    %45 = arith.maximumf %41, %42 : vector<1x4xf32>
    %46 = arith.maximumf %45, %43 : vector<1x4xf32>
    %47 = arith.maximumf %46, %44 : vector<1x4xf32>
    %c4_i32_18 = arith.constant 4 : i32
    %48 = vector.broadcast %c4_i32_18 : i32 to vector<1x4xi32>
    %49 = arith.cmpf oge, %44, %47 : vector<1x4xf32>
    %c3_i32 = arith.constant 3 : i32
    %50 = vector.broadcast %c3_i32 : i32 to vector<1x4xi32>
    %51 = arith.select %49, %50, %48 : vector<1x4xi1>, vector<1x4xi32>
    %52 = arith.cmpf oge, %43, %47 : vector<1x4xf32>
    %c2_i32_19 = arith.constant 2 : i32
    %53 = vector.broadcast %c2_i32_19 : i32 to vector<1x4xi32>
    %54 = arith.select %52, %53, %51 : vector<1x4xi1>, vector<1x4xi32>
    %55 = arith.cmpf oge, %42, %47 : vector<1x4xf32>
    %c1_i32 = arith.constant 1 : i32
    %56 = vector.broadcast %c1_i32 : i32 to vector<1x4xi32>
    %57 = arith.select %55, %56, %54 : vector<1x4xi1>, vector<1x4xi32>
    %58 = arith.cmpf oge, %41, %47 : vector<1x4xf32>
    %c0_i32 = arith.constant 0 : i32
    %59 = vector.broadcast %c0_i32 : i32 to vector<1x4xi32>
    %60 = arith.select %58, %59, %57 : vector<1x4xi1>, vector<1x4xi32>
    %c0_i32_20 = arith.constant 0 : i32
    %61 = vector.broadcast %c0_i32_20 : i32 to vector<1x4xi32>
    %62 = arith.cmpi eq, %60, %61 : vector<1x4xi32>
    %cst_21 = arith.constant 0xFF800000 : f32
    %63 = vector.broadcast %cst_21 : f32 to vector<1x4xf32>
    %64 = arith.select %62, %63, %41 : vector<1x4xi1>, vector<1x4xf32>
    %c1_i32_22 = arith.constant 1 : i32
    %65 = vector.broadcast %c1_i32_22 : i32 to vector<1x4xi32>
    %66 = arith.cmpi eq, %60, %65 : vector<1x4xi32>
    %cst_23 = arith.constant 0xFF800000 : f32
    %67 = vector.broadcast %cst_23 : f32 to vector<1x4xf32>
    %68 = arith.select %66, %67, %42 : vector<1x4xi1>, vector<1x4xf32>
    %c2_i32_24 = arith.constant 2 : i32
    %69 = vector.broadcast %c2_i32_24 : i32 to vector<1x4xi32>
    %70 = arith.cmpi eq, %60, %69 : vector<1x4xi32>
    %cst_25 = arith.constant 0xFF800000 : f32
    %71 = vector.broadcast %cst_25 : f32 to vector<1x4xf32>
    %72 = arith.select %70, %71, %43 : vector<1x4xi1>, vector<1x4xf32>
    %c3_i32_26 = arith.constant 3 : i32
    %73 = vector.broadcast %c3_i32_26 : i32 to vector<1x4xi32>
    %74 = arith.cmpi eq, %60, %73 : vector<1x4xi32>
    %cst_27 = arith.constant 0xFF800000 : f32
    %75 = vector.broadcast %cst_27 : f32 to vector<1x4xf32>
    %76 = arith.select %74, %75, %44 : vector<1x4xi1>, vector<1x4xf32>
    %77 = arith.maximumf %64, %68 : vector<1x4xf32>
    %78 = arith.maximumf %77, %72 : vector<1x4xf32>
    %79 = arith.maximumf %78, %76 : vector<1x4xf32>
    %c4_i32_28 = arith.constant 4 : i32
    %80 = vector.broadcast %c4_i32_28 : i32 to vector<1x4xi32>
    %81 = arith.cmpf oge, %76, %79 : vector<1x4xf32>
    %c3_i32_29 = arith.constant 3 : i32
    %82 = vector.broadcast %c3_i32_29 : i32 to vector<1x4xi32>
    %83 = arith.select %81, %82, %80 : vector<1x4xi1>, vector<1x4xi32>
    %84 = arith.cmpf oge, %72, %79 : vector<1x4xf32>
    %c2_i32_30 = arith.constant 2 : i32
    %85 = vector.broadcast %c2_i32_30 : i32 to vector<1x4xi32>
    %86 = arith.select %84, %85, %83 : vector<1x4xi1>, vector<1x4xi32>
    %87 = arith.cmpf oge, %68, %79 : vector<1x4xf32>
    %c1_i32_31 = arith.constant 1 : i32
    %88 = vector.broadcast %c1_i32_31 : i32 to vector<1x4xi32>
    %89 = arith.select %87, %88, %86 : vector<1x4xi1>, vector<1x4xi32>
    %90 = arith.cmpf oge, %64, %79 : vector<1x4xf32>
    %c0_i32_32 = arith.constant 0 : i32
    %91 = vector.broadcast %c0_i32_32 : i32 to vector<1x4xi32>
    %92 = arith.select %90, %91, %89 : vector<1x4xi1>, vector<1x4xi32>
    %93 = arith.minsi %60, %92 : vector<1x4xi32>
    %94 = arith.maxsi %60, %92 : vector<1x4xi32>
    %95 = tpu.concatenate %19, %38 in 1 : vector<1x11xf32>, vector<1x29xf32> -> vector<1x40xf32>
    %c112 = arith.constant 112 : index
    %c0_33 = arith.constant 0 : index
    %96 = vector.load %arg1[%c112, %c0_33] : memref<208x40xbf16, #tpu.memory_space<vmem>>, vector<40x33xbf16>
    %97 = arith.truncf %95 : vector<1x40xf32> to vector<1x40xbf16>
    %cst_34 = arith.constant dense<0.000000e+00> : vector<1x33xf32>
    %98 = tpu.matmul %97, %96, %cst_34 {dimension_numbers = #tpu.dot_dimension_numbers<[1], [0], [0], [1], [0, 0, 1, 1], [], []>} : vector<1x40xbf16>, vector<40x33xbf16>, vector<1x33xf32> -> vector<1x33xf32>
    %cst_35 = arith.constant 0.000000e+00 : f32
    %99 = vector.broadcast %cst_35 : f32 to vector<1x33xf32>
    %100 = arith.maximumf %98, %99 : vector<1x33xf32>
    %c160 = arith.constant 160 : index
    %c0_36 = arith.constant 0 : index
    %101 = vector.load %arg1[%c160, %c0_36] : memref<208x40xbf16, #tpu.memory_space<vmem>>, vector<33x10xbf16>
    %102 = arith.truncf %100 : vector<1x33xf32> to vector<1x33xbf16>
    %cst_37 = arith.constant dense<0.000000e+00> : vector<1x10xf32>
    %103 = tpu.matmul %102, %101, %cst_37 {dimension_numbers = #tpu.dot_dimension_numbers<[1], [0], [0], [1], [0, 0, 1, 1], [], []>} : vector<1x33xbf16>, vector<33x10xbf16>, vector<1x10xf32> -> vector<1x10xf32>
    %104 = vector.extract_strided_slice %103 {offsets = [0, 0], sizes = [1, 8], strides = [1, 1]} : vector<1x10xf32> to vector<1x8xf32>
    %105 = tpu.iota {dimensions = array<i32: 1>} : vector<1x8xi32>
    %cst_38 = arith.constant dense<0xFF800000> : vector<1xf32>
    %106 = vector.multi_reduction <maximumf>, %104, %cst_38 [1] : vector<1x8xf32> to vector<1xf32>
    %107 = vector.shape_cast %106 : vector<1xf32> to vector<1x1xf32>
    %108 = vector.broadcast %107 : vector<1x1xf32> to vector<1x8xf32>
    %109 = arith.cmpf oge, %104, %108 : vector<1x8xf32>
    %c8_i32 = arith.constant 8 : i32
    %110 = vector.broadcast %c8_i32 : i32 to vector<1x8xi32>
    %111 = arith.select %109, %105, %110 : vector<1x8xi1>, vector<1x8xi32>
    %cst_39 = arith.constant dense<2147483647> : vector<1xi32>
    %112 = vector.multi_reduction <minsi>, %111, %cst_39 [1] : vector<1x8xi32> to vector<1xi32>
    %113 = vector.shape_cast %112 : vector<1xi32> to vector<1x1xi32>
    %114 = vector.broadcast %113 : vector<1x1xi32> to vector<1x8xi32>
    %115 = arith.cmpi eq, %105, %114 : vector<1x8xi32>
    %cst_40 = arith.constant 0xFF800000 : f32
    %116 = vector.broadcast %cst_40 : f32 to vector<1x8xf32>
    %117 = arith.select %115, %116, %104 : vector<1x8xi1>, vector<1x8xf32>
    %cst_41 = arith.constant dense<0xFF800000> : vector<1xf32>
    %118 = vector.multi_reduction <maximumf>, %117, %cst_41 [1] : vector<1x8xf32> to vector<1xf32>
    %119 = vector.shape_cast %118 : vector<1xf32> to vector<1x1xf32>
    %120 = vector.broadcast %119 : vector<1x1xf32> to vector<1x8xf32>
    %121 = arith.cmpf oge, %117, %120 : vector<1x8xf32>
    %c8_i32_42 = arith.constant 8 : i32
    %122 = vector.broadcast %c8_i32_42 : i32 to vector<1x8xi32>
    %123 = arith.select %121, %105, %122 : vector<1x8xi1>, vector<1x8xi32>
    %cst_43 = arith.constant dense<2147483647> : vector<1xi32>
    %124 = vector.multi_reduction <minsi>, %123, %cst_43 [1] : vector<1x8xi32> to vector<1xi32>
    %125 = vector.shape_cast %124 : vector<1xi32> to vector<1x1xi32>
    %126 = arith.minsi %113, %125 : vector<1x1xi32>
    %127 = arith.maxsi %113, %125 : vector<1x1xi32>
    %128 = tpu.concatenate %126, %127 in 1 : vector<1x1xi32>, vector<1x1xi32> -> vector<1x2xi32>
    %129 = vector.extract_strided_slice %103 {offsets = [0, 8], sizes = [1, 2], strides = [1, 1]} : vector<1x10xf32> to vector<1x2xf32>
    %130 = tpu.iota {dimensions = array<i32: 1>} : vector<1x4xi32>
    %c2_i32_44 = arith.constant 2 : i32
    %131 = vector.broadcast %c2_i32_44 : i32 to vector<1x4xi32>
    %132 = arith.cmpi slt, %130, %131 : vector<1x4xi32>
    %133 = vector.extract_strided_slice %20 {offsets = [0, 0], sizes = [1, 1], strides = [1, 1]} : vector<1x2xf32> to vector<1x1xf32>
    %134 = vector.extract_strided_slice %20 {offsets = [0, 1], sizes = [1, 1], strides = [1, 1]} : vector<1x2xf32> to vector<1x1xf32>
    %135 = vector.shape_cast %133 : vector<1x1xf32> to vector<1x1xf32>
    %136 = vector.broadcast %135 : vector<1x1xf32> to vector<1x4xf32>
    %137 = vector.shape_cast %134 : vector<1x1xf32> to vector<1x1xf32>
    %138 = vector.broadcast %137 : vector<1x1xf32> to vector<1x4xf32>
    %139 = arith.select %132, %136, %138 : vector<1x4xi1>, vector<1x4xf32>
    %140 = arith.sitofp %93 : vector<1x4xi32> to vector<1x4xf32>
    %141 = arith.sitofp %94 : vector<1x4xi32> to vector<1x4xf32>
    %142 = arith.sitofp %128 : vector<1x2xi32> to vector<1x2xf32>
    %143 = tpu.concatenate %139, %39, %21, %40, %129, %140, %141, %142 in 1 : vector<1x4xf32>, vector<1x4xf32>, vector<1x8xf32>, vector<1x8xf32>, vector<1x2xf32>, vector<1x4xf32>, vector<1x4xf32>, vector<1x2xf32> -> vector<1x36xf32>
    %c0_45 = arith.constant 0 : index
    %c0_46 = arith.constant 0 : index
    %144 = vector.load %arg2[%c0_45, %c0_46] : memref<1x36xf32, #tpu.memory_space<vmem>>, vector<1x36xf32>
    tpu.vector_store %arg2[%c0_45, %c0_46], %143 {strides = array<i32>} : memref<1x36xf32, #tpu.memory_space<vmem>>, vector<1x36xf32>,
    return
  }
}

</mosaic_0001>

<llo_original>
// kernel: tpu_custom_call.1
$region0: #{tpu_custom_call.1}
  #allocation0 [shape = 'u32[]', space=smem, size = 0x4, offset = 0x4, fixed_abs, tag = 'smem constant byte address 0x4 - core index']
  #allocation1 [shape = 'u32[144,128]{1,0:T(1,128)}', space=vmem, size = 0x12000, scoped, tag = 'internal scratch']
  %s0 = inlined_call_operand.vmem [shape: f32[2,12], index: 0, kind: input, shape index: {}]
  %s1 = inlined_call_operand.vmem [shape: bf16[208,40], index: 1, kind: input, shape index: {}]
  %s2 = inlined_call_operand.hbm [shape: f32[1,36], index: 2, kind: output, shape index: {}]
  %s3 = sld [smem:[#allocation0]]
  $region18: #{tpu_custom_call.1} parent=0
    _
  %s5 = ssub.s32 1, %s3
  %s6 = scalar_select 0, %s5, %s3
  $region1: #{tpu_custom_call.1} parent=0
    #allocation2 [shape = 'u8[512]{0}', space=vmem, size = 0x400, scoped, tag = 'output window, operand 0, single buffered']
    #allocation3 [shape = 's32[1]{0}', space=sflag, size = 0x4, scoped, tag = 'scoped memory for tpu_custom_call.1']
    %7 = vsyncpa [#allocation3], 0
    // Predicated region
    $region2: #{tpu_custom_call.1} parent=1 // pred_check
      _
    $region3: #{tpu_custom_call.1} parent=1 // pred_check_branch
      %9 = sbr.rel (0) target = $region5
    $region4: #{tpu_custom_call.1} parent=1 // pred_region
      _
    $region5: #{tpu_custom_call.1} parent=1 // pred_fallthru
      _
    // Predicated region
    $region6: #{tpu_custom_call.1} parent=1 // pred_check
      _
    $region7: #{tpu_custom_call.1} parent=1 // pred_check_branch
      %11 = sbr.rel (0) target = $region9
    $region8: #{tpu_custom_call.1} parent=1 // pred_region
      _
    $region9: #{tpu_custom_call.1} parent=1 // pred_fallthru
      _
    %v13 = vld [vmem:[%s0] sm:$0x1]
    %vm14 = vcmask 97280
    %v15 = vsel %vm14, %v13, 1.0
    %v16 = vld [vmem:[%s1] sm:$0xf]
    %v17 = vld [vmem:[%s1 + $0x4] sm:$0x7]
    %v18 = vpack.c.bf16 %v15, %v15
    %v21 = vunpack.c.l.b16 %v16
    %v22 = vunpack.c.l.b16 %v17
    %v23 = vpack.c.b16 %v22, %v21
    %vm24 = vcmask 105472
    %v26 = vsel %vm24, %v18, 0
    %vm28 = vcmask 1045504
    %vm29 = vcmask 1046528
    %v30 = vsel %vm28, 4294967295, 65535
    %v31 = vsel %vm29, %v30, 0
    %v33 = vand.u32 %v23, %v31
    %35 = vmatprep.subr.bf16.mxu0 0
    %36 = vmatpush1.bf16.msra.mxu0 0
    %37 = vmatprep.subr.bf16.mxu0 0
    %38 = vmatpush1.bf16.msra.mxu0 0
    %39 = vmatprep.subr.bf16.mxu0 0
    %40 = vmatpush1.bf16.msra.mxu0 0
    %41 = vmatprep.subr.bf16.mxu0 0
    %42 = vmatpush1.bf16.msra.mxu0 0
    %43 = vmatprep.subr.bf16.mxu0 0
    %44 = vmatpush1.bf16.msra.mxu0 0
    %45 = vmatprep.subr.bf16.mxu0 0
    %46 = vmatpush1.bf16.msra.mxu0 0
    %47 = vmatprep.subr.bf16.mxu0 0
    %48 = vmatpush1.bf16.msra.mxu0 0
    %49 = vmatprep.subr.bf16.mxu0 0
    %50 = vmatpush1.bf16.msra.mxu0 %v33
    %51 = vmatprep.subr.bf16.mxu0 0
    %52 = vmatpush2.bf16.msra.mxu0 0
    %53 = vmatprep.subr.bf16.mxu0 0
    %54 = vmatpush2.bf16.msra.mxu0 0
    %55 = vmatprep.subr.bf16.mxu0 0
    %56 = vmatpush2.bf16.msra.mxu0 0
    %57 = vmatprep.subr.bf16.mxu0 0
    %58 = vmatpush2.bf16.msra.mxu0 0
    %59 = vmatprep.subr.bf16.mxu0 0
    %60 = vmatpush2.bf16.msra.mxu0 0
    %61 = vmatprep.subr.bf16.mxu0 0
    %62 = vmatpush2.bf16.msra.mxu0 0
    %63 = vmatprep.subr.bf16.mxu0 0
    %64 = vmatpush2.bf16.msra.mxu0 0
    %65 = vmatprep.subr.bf16.mxu0 0
    %66 = vmatpush2.bf16.msra.mxu0 0
    %67 = vmatprep.mubr.bf16.mxu0 0
    %68 = vmatmul.mubr.bf16.gmra.mxu0 %v26
    %v69 = vpop.f32.mrf.mxu0
    %v70 = vadd.f32 0.0, %v69
    %v71 = vpop.f32.mrf.mxu0
    %v72 = vpop.f32.mrf.mxu0
    %v73 = vpop.f32.mrf.mxu0
    %74 = vdwg.mxu0
    %v75 = vmax.f32 %v70, 0.0
    %v76 = vld [vmem:[%s1 + $0x8] sm:$0xf]
    %v77 = vld [vmem:[%s1 + $0xc] sm:$0xf]
    %v78 = vld [vmem:[%s1 + $0x10] sm:$0xf]
    %v79 = vld [vmem:[%s1 + $0x14] sm:$0x1]
    %v80 = vpack.c.bf16 %v75, %v75
    %v85 = vunpack.c.l.b16 %v76
    %v86 = vunpack.c.l.b16 %v77
    %v87 = vunpack.c.l.b16 %v78
    %v88 = vunpack.c.l.b16 %v79
    %v89 = vpack.c.b16 %v86, %v85
    %v90 = vpack.c.b16 %v88, %v87
    %vm92 = vcmask 203776
    %v94 = vsel %vm92, %v80, 0
    %vm96 = vcmask 1043456
    %vm97 = vcmask 1044480
    %v98 = vsel %vm96, 4294967295, 65535
    %v99 = vsel %vm97, %v98, 0
    %v101 = vand.u32 %v90, %v99
    %103 = vmatprep.subr.bf16.mxu0 0
    %104 = vmatpush1.bf16.msra.mxu0 0
    %105 = vmatprep.subr.bf16.mxu0 0
    %106 = vmatpush1.bf16.msra.mxu0 0
    %107 = vmatprep.subr.bf16.mxu0 0
    %108 = vmatpush1.bf16.msra.mxu0 0
    %109 = vmatprep.subr.bf16.mxu0 0
    %110 = vmatpush1.bf16.msra.mxu0 0
    %111 = vmatprep.subr.bf16.mxu0 0
    %112 = vmatpush1.bf16.msra.mxu0 0
    %113 = vmatprep.subr.bf16.mxu0 0
    %114 = vmatpush1.bf16.msra.mxu0 0
    %115 = vmatprep.subr.bf16.mxu0 0
    %116 = vmatpush1.bf16.msra.mxu0 %v101
    %117 = vmatprep.subr.bf16.mxu0 0
    %118 = vmatpush1.bf16.msra.mxu0 %v89
    %119 = vmatprep.subr.bf16.mxu0 0
    %120 = vmatpush2.bf16.msra.mxu0 0
    %121 = vmatprep.subr.bf16.mxu0 0
    %122 = vmatpush2.bf16.msra.mxu0 0
    %123 = vmatprep.subr.bf16.mxu0 0
    %124 = vmatpush2.bf16.msra.mxu0 0
    %125 = vmatprep.subr.bf16.mxu0 0
    %126 = vmatpush2.bf16.msra.mxu0 0
    %127 = vmatprep.subr.bf16.mxu0 0
    %128 = vmatpush2.bf16.msra.mxu0 0
    %129 = vmatprep.subr.bf16.mxu0 0
    %130 = vmatpush2.bf16.msra.mxu0 0
    %131 = vmatprep.subr.bf16.mxu0 0
    %132 = vmatpush2.bf16.msra.mxu0 0
    %133 = vmatprep.subr.bf16.mxu0 0
    %134 = vmatpush2.bf16.msra.mxu0 0
    %135 = vmatprep.mubr.bf16.mxu0 0
    %136 = vmatmul.mubr.bf16.gmra.mxu0 %v94
    %v137 = vpop.f32.mrf.mxu0
    %v138 = vadd.f32 0.0, %v137
    %v139 = vpop.f32.mrf.mxu0
    %v140 = vpop.f32.mrf.mxu0
    %v141 = vpop.f32.mrf.mxu0
    %142 = vdwg.mxu0
    %v143 = vlaneseq
    %v144 = vand.u32 %v143, 127
    %vm145 = vcmp.lt.s32.totalorder %v144, 2
    %vm146 = vcmp.gt.f32.partialorder %v138, 0.0
    %v147 = vsel %vm146, 1.0, 0.0
    %v148 = vsel %vm145, %v147, %v138
    %v149 = vld [vmem:[%s1 + $0x18] sm:$0xf]
    %v150 = vld [vmem:[%s1 + $0x1c] sm:$0x3]
    %v151 = vpack.c.bf16 %v148, %v148
    %v154 = vunpack.c.l.b16 %v149
    %v155 = vunpack.c.l.b16 %v150
    %v156 = vpack.c.b16 %v155, %v154
    %vm157 = vcmask 89088
    %v159 = vsel %vm157, %v151, 0
    %v161 = vsel %vm97, 4294967295, 65535
    %v162 = vsel %vm28, %v161, 0
    %v164 = vand.u32 %v156, %v162
    %166 = vmatprep.subr.bf16.mxu0 0
    %167 = vmatpush1.bf16.msra.mxu0 0
    %168 = vmatprep.subr.bf16.mxu0 0
    %169 = vmatpush1.bf16.msra.mxu0 0
    %170 = vmatprep.subr.bf16.mxu0 0
    %171 = vmatpush1.bf16.msra.mxu0 0
    %172 = vmatprep.subr.bf16.mxu0 0
    %173 = vmatpush1.bf16.msra.mxu0 0
    %174 = vmatprep.subr.bf16.mxu0 0
    %175 = vmatpush1.bf16.msra.mxu0 0
    %176 = vmatprep.subr.bf16.mxu0 0
    %177 = vmatpush1.bf16.msra.mxu0 0
    %178 = vmatprep.subr.bf16.mxu0 0
    %179 = vmatpush1.bf16.msra.mxu0 0
    %180 = vmatprep.subr.bf16.mxu0 0
    %181 = vmatpush1.bf16.msra.mxu0 %v164
    %182 = vmatprep.subr.bf16.mxu0 0
    %183 = vmatpush2.bf16.msra.mxu0 0
    %184 = vmatprep.subr.bf16.mxu0 0
    %185 = vmatpush2.bf16.msra.mxu0 0
    %186 = vmatprep.subr.bf16.mxu0 0
    %187 = vmatpush2.bf16.msra.mxu0 0
    %188 = vmatprep.subr.bf16.mxu0 0
    %189 = vmatpush2.bf16.msra.mxu0 0
    %190 = vmatprep.subr.bf16.mxu0 0
    %191 = vmatpush2.bf16.msra.mxu0 0
    %192 = vmatprep.subr.bf16.mxu0 0
    %193 = vmatpush2.bf16.msra.mxu0 0
    %194 = vmatprep.subr.bf16.mxu0 0
    %195 = vmatpush2.bf16.msra.mxu0 0
    %196 = vmatprep.subr.bf16.mxu0 0
    %197 = vmatpush2.bf16.msra.mxu0 0
    %198 = vmatprep.mubr.bf16.mxu0 0
    %199 = vmatmul.mubr.bf16.gmra.mxu0 %v159
    %v200 = vpop.f32.mrf.mxu0
    %v201 = vadd.f32 0.0, %v200
    %v202 = vpop.f32.mrf.mxu0
    %v203 = vpop.f32.mrf.mxu0
    %v204 = vpop.f32.mrf.mxu0
    %205 = vdwg.mxu0
    %v206 = vmax.f32 %v201, 0.0
    %v207 = vld [vmem:[%s1 + $0x20] sm:$0xf]
    %v208 = vld [vmem:[%s1 + $0x24] sm:$0xf]
    %v209 = vld [vmem:[%s1 + $0x28] sm:$0xf]
    %v210 = vld [vmem:[%s1 + $0x2c] sm:$0xf]
    %v211 = vld [vmem:[%s1 + $0x30] sm:$0x1]
    %v212 = vpack.c.bf16 %v206, %v206
    %v218 = vunpack.c.l.b16 %v207
    %v219 = vunpack.c.l.b16 %v208
    %v220 = vunpack.c.l.b16 %v209
    %v221 = vunpack.c.l.b16 %v210
    %v222 = vunpack.c.l.b16 %v211
    %v223 = vpack.c.b16 %v219, %v218
    %v224 = vpack.c.b16 %v221, %v220
    %v225 = vpack.c.b16 %v222, %v222
    %vm228 = vcmask 269312
    %v230 = vsel %vm228, %v212, 0
    %vm232 = vcmask 1040384
    %v233 = vsel 0, 4294967295, 65535
    %v234 = vsel %vm232, %v233, 0
    %v236 = vand.u32 %v225, %v234
    %238 = vmatprep.subr.bf16.mxu0 0
    %239 = vmatpush1.bf16.msra.mxu0 0
    %240 = vmatprep.subr.bf16.mxu0 0
    %241 = vmatpush1.bf16.msra.mxu0 0
    %242 = vmatprep.subr.bf16.mxu0 0
    %243 = vmatpush1.bf16.msra.mxu0 0
    %244 = vmatprep.subr.bf16.mxu0 0
    %245 = vmatpush1.bf16.msra.mxu0 0
    %246 = vmatprep.subr.bf16.mxu0 0
    %247 = vmatpush1.bf16.msra.mxu0 0
    %248 = vmatprep.subr.bf16.mxu0 0
    %249 = vmatpush1.bf16.msra.mxu0 %v236
    %250 = vmatprep.subr.bf16.mxu0 0
    %251 = vmatpush1.bf16.msra.mxu0 %v224
    %252 = vmatprep.subr.bf16.mxu0 0
    %253 = vmatpush1.bf16.msra.mxu0 %v223
    %254 = vmatprep.subr.bf16.mxu0 0
    %255 = vmatpush2.bf16.msra.mxu0 0
    %256 = vmatprep.subr.bf16.mxu0 0
    %257 = vmatpush2.bf16.msra.mxu0 0
    %258 = vmatprep.subr.bf16.mxu0 0
    %259 = vmatpush2.bf16.msra.mxu0 0
    %260 = vmatprep.subr.bf16.mxu0 0
    %261 = vmatpush2.bf16.msra.mxu0 0
    %262 = vmatprep.subr.bf16.mxu0 0
    %263 = vmatpush2.bf16.msra.mxu0 0
    %264 = vmatprep.subr.bf16.mxu0 0
    %265 = vmatpush2.bf16.msra.mxu0 0
    %266 = vmatprep.subr.bf16.mxu0 0
    %267 = vmatpush2.bf16.msra.mxu0 0
    %268 = vmatprep.subr.bf16.mxu0 0
    %269 = vmatpush2.bf16.msra.mxu0 0
    %270 = vmatprep.mubr.bf16.mxu0 0
    %271 = vmatmul.mubr.bf16.gmra.mxu0 %v230
    %v272 = vpop.f32.mrf.mxu0
    %v273 = vadd.f32 0.0, %v272
    %v274 = vpop.f32.mrf.mxu0
    %v275 = vpop.f32.mrf.mxu0
    %v276 = vpop.f32.mrf.mxu0
    %277 = vdwg.mxu0
    %vm278 = vcmp.lt.s32.totalorder %v144, 4
    %vm279 = vcmp.gt.f32.partialorder %v273, 0.0
    %v280 = vsel %vm279, 1.0, 0.0
    %v281 = vsel %vm278, %v280, %v273
    %283 = vrot.lane.b32.xlu0 %v273, 124
    %v284 = vpop.permute.xlu0 %283
    %v286 = vmax.f32 %v273, %v284
    %287 = vrot.lane.b32.xlu0 %v273, 120
    %v288 = vpop.permute.xlu0 %287
    %v290 = vmax.f32 %v286, %v288
    %291 = vrot.lane.b32.xlu0 %v273, 116
    %v292 = vpop.permute.xlu0 %291
    %v294 = vmax.f32 %v290, %v292
    %296 = vrot.lane.b32.xlu0 %v294, 12
    %v297 = vpop.permute.xlu0 %296
    %vm299 = vcmp.ge.f32.partialorder %v273, %v297
    %v300 = vsel %vm299, 3, 4
    %301 = vrot.lane.b32.xlu0 %v294, 8
    %v302 = vpop.permute.xlu0 %301
    %vm304 = vcmp.ge.f32.partialorder %v273, %v302
    %305 = vrot.lane.b32.xlu0 %v300, 124
    %v306 = vpop.permute.xlu0 %305
    %v307 = vsel %vm304, 2, %v306
    %308 = vrot.lane.b32.xlu0 %v294, 4
    %v309 = vpop.permute.xlu0 %308
    %vm311 = vcmp.ge.f32.partialorder %v273, %v309
    %312 = vrot.lane.b32.xlu0 %v307, 124
    %v313 = vpop.permute.xlu0 %312
    %v314 = vsel %vm311, 1, %v313
    %vm315 = vcmp.ge.f32.partialorder %v273, %v294
    %316 = vrot.lane.b32.xlu0 %v314, 124
    %v317 = vpop.permute.xlu0 %316
    %v318 = vsel %vm315, 0, %v317
    %vm319 = vcmp.eq.s32.totalorder %v318, 0
    %v320 = vsel %vm319, -inf, %v273
    %vm321 = vcmp.eq.s32.totalorder %v318, 1
    %v322 = vsel %vm321, -inf, %v284
    %vm323 = vcmp.eq.s32.totalorder %v318, 2
    %v324 = vsel %vm323, -inf, %v288
    %vm325 = vcmp.eq.s32.totalorder %v318, 3
    %v326 = vsel %vm325, -inf, %v292
    %v327 = vmax.f32 %v320, %v322
    %v328 = vmax.f32 %v327, %v324
    %v329 = vmax.f32 %v328, %v326
    %vm330 = vcmp.ge.f32.partialorder %v326, %v329
    %v331 = vsel %vm330, 3, 4
    %vm332 = vcmp.ge.f32.partialorder %v324, %v329
    %v333 = vsel %vm332, 2, %v331
    %vm334 = vcmp.ge.f32.partialorder %v322, %v329
    %v335 = vsel %vm334, 1, %v333
    %vm336 = vcmp.ge.f32.partialorder %v320, %v329
    %v337 = vsel %vm336, 0, %v335
    %vm338 = vcmp.lt.s32.totalorder %v318, %v337
    %v339 = vsel %vm338, %v318, %v337
    %vm340 = vcmp.gt.s32.totalorder %v318, %v337
    %v341 = vsel %vm340, %v318, %v337
    %343 = vrot.lane.b32.xlu0 %v281, 11
    %v344 = vpop.permute.xlu0 %343
    %v346 = vsel %vm157, %v148, %v344
    %v347 = vld [vmem:[%s1 + $0x38] sm:$0xf]
    %v348 = vld [vmem:[%s1 + $0x3c] sm:$0xf]
    %v349 = vld [vmem:[%s1 + $0x40] sm:$0xf]
    %v350 = vld [vmem:[%s1 + $0x44] sm:$0xf]
    %v351 = vld [vmem:[%s1 + $0x48] sm:$0xf]
    %v352 = vpack.c.bf16 %v346, %v346
    %v358 = vunpack.c.l.b16 %v347
    %v359 = vunpack.c.l.b16 %v348
    %v360 = vunpack.c.l.b16 %v349
    %v361 = vunpack.c.l.b16 %v350
    %v362 = vunpack.c.l.b16 %v351
    %v363 = vpack.c.b16 %v359, %v358
    %v364 = vpack.c.b16 %v361, %v360
    %v365 = vpack.c.b16 %v362, %v362
    %vm368 = vcmask 326656
    %v370 = vsel %vm368, %v352, 0
    %v373 = vsel %vm96, %v365, 0
    %375 = vmatprep.subr.bf16.mxu0 0
    %376 = vmatpush1.bf16.msra.mxu0 0
    %377 = vmatprep.subr.bf16.mxu0 0
    %378 = vmatpush1.bf16.msra.mxu0 0
    %379 = vmatprep.subr.bf16.mxu0 0
    %380 = vmatpush1.bf16.msra.mxu0 0
    %381 = vmatprep.subr.bf16.mxu0 0
    %382 = vmatpush1.bf16.msra.mxu0 0
    %383 = vmatprep.subr.bf16.mxu0 0
    %384 = vmatpush1.bf16.msra.mxu0 0
    %385 = vmatprep.subr.bf16.mxu0 0
    %386 = vmatpush1.bf16.msra.mxu0 %v373
    %387 = vmatprep.subr.bf16.mxu0 0
    %388 = vmatpush1.bf16.msra.mxu0 %v364
    %389 = vmatprep.subr.bf16.mxu0 0
    %390 = vmatpush1.bf16.msra.mxu0 %v363
    %391 = vmatprep.subr.bf16.mxu0 0
    %392 = vmatpush2.bf16.msra.mxu0 0
    %393 = vmatprep.subr.bf16.mxu0 0
    %394 = vmatpush2.bf16.msra.mxu0 0
    %395 = vmatprep.subr.bf16.mxu0 0
    %396 = vmatpush2.bf16.msra.mxu0 0
    %397 = vmatprep.subr.bf16.mxu0 0
    %398 = vmatpush2.bf16.msra.mxu0 0
    %399 = vmatprep.subr.bf16.mxu0 0
    %400 = vmatpush2.bf16.msra.mxu0 0
    %401 = vmatprep.subr.bf16.mxu0 0
    %402 = vmatpush2.bf16.msra.mxu0 0
    %403 = vmatprep.subr.bf16.mxu0 0
    %404 = vmatpush2.bf16.msra.mxu0 0
    %405 = vmatprep.subr.bf16.mxu0 0
    %406 = vmatpush2.bf16.msra.mxu0 0
    %407 = vmatprep.mubr.bf16.mxu0 0
    %408 = vmatmul.mubr.bf16.gmra.mxu0 %v370
    %v409 = vpop.f32.mrf.mxu0
    %v410 = vadd.f32 0.0, %v409
    %v411 = vpop.f32.mrf.mxu0
    %v412 = vpop.f32.mrf.mxu0
    %v413 = vpop.f32.mrf.mxu0
    %414 = vdwg.mxu0
    %v415 = vmax.f32 %v410, 0.0
    %v416 = vld [vmem:[%s1 + $0x50] sm:$0xf]
    %v417 = vld [vmem:[%s1 + $0x54] sm:$0xf]
    %v418 = vld [vmem:[%s1 + $0x58] sm:$0xf]
    %v419 = vld [vmem:[%s1 + $0x5c] sm:$0xf]
    %v420 = vld [vmem:[%s1 + $0x60] sm:$0x1]
    %v421 = vpack.c.bf16 %v415, %v415
    %v427 = vunpack.c.l.b16 %v416
    %v428 = vunpack.c.l.b16 %v417
    %v429 = vunpack.c.l.b16 %v418
    %v430 = vunpack.c.l.b16 %v419
    %v431 = vunpack.c.l.b16 %v420
    %v432 = vpack.c.b16 %v428, %v427
    %v433 = vpack.c.b16 %v430, %v429
    %v434 = vpack.c.b16 %v431, %v431
    %v438 = vsel %vm228, %v421, 0
    %v441 = vand.u32 %v434, %v234
    %443 = vmatprep.subr.bf16.mxu0 0
    %444 = vmatpush1.bf16.msra.mxu0 0
    %445 = vmatprep.subr.bf16.mxu0 0
    %446 = vmatpush1.bf16.msra.mxu0 0
    %447 = vmatprep.subr.bf16.mxu0 0
    %448 = vmatpush1.bf16.msra.mxu0 0
    %449 = vmatprep.subr.bf16.mxu0 0
    %450 = vmatpush1.bf16.msra.mxu0 0
    %451 = vmatprep.subr.bf16.mxu0 0
    %452 = vmatpush1.bf16.msra.mxu0 0
    %453 = vmatprep.subr.bf16.mxu0 0
    %454 = vmatpush1.bf16.msra.mxu0 %v441
    %455 = vmatprep.subr.bf16.mxu0 0
    %456 = vmatpush1.bf16.msra.mxu0 %v433
    %457 = vmatprep.subr.bf16.mxu0 0
    %458 = vmatpush1.bf16.msra.mxu0 %v432
    %459 = vmatprep.subr.bf16.mxu0 0
    %460 = vmatpush2.bf16.msra.mxu0 0
    %461 = vmatprep.subr.bf16.mxu0 0
    %462 = vmatpush2.bf16.msra.mxu0 0
    %463 = vmatprep.subr.bf16.mxu0 0
    %464 = vmatpush2.bf16.msra.mxu0 0
    %465 = vmatprep.subr.bf16.mxu0 0
    %466 = vmatpush2.bf16.msra.mxu0 0
    %467 = vmatprep.subr.bf16.mxu0 0
    %468 = vmatpush2.bf16.msra.mxu0 0
    %469 = vmatprep.subr.bf16.mxu0 0
    %470 = vmatpush2.bf16.msra.mxu0 0
    %471 = vmatprep.subr.bf16.mxu0 0
    %472 = vmatpush2.bf16.msra.mxu0 0
    %473 = vmatprep.subr.bf16.mxu0 0
    %474 = vmatpush2.bf16.msra.mxu0 0
    %475 = vmatprep.mubr.bf16.mxu0 0
    %476 = vmatmul.mubr.bf16.gmra.mxu0 %v438
    %v477 = vpop.f32.mrf.mxu0
    %v478 = vadd.f32 0.0, %v477
    %v479 = vpop.f32.mrf.mxu0
    %v480 = vpop.f32.mrf.mxu0
    %v481 = vpop.f32.mrf.mxu0
    %482 = vdwg.mxu0
    %vm483 = vcmask 57344
    %v484 = vsel %vm483, %v478, -inf
    %485 = vmax.xlane.f32.xlu0 %v484
    %v486 = vpop.xlane.xlu0 %485
    %vm487 = vcmp.ge.f32.partialorder %v478, %v486
    %v488 = vsel %vm487, %v144, 8
    %v489 = vsel %vm483, %v488, 2147483647
    %v490 = vand.u32 %v489, 65535
    %v491 = vshra.s32 %v489, 16
    %v492 = vcvt.s32.f32 %v490
    %v493 = vcvt.s32.f32 %v491
    %494 = vmin.xlane.f32.xlu0 %v493
    %v495 = vpop.xlane.xlu0 %494
    %vm496 = vcmp.eq.f32.partialorder %v493, %v495
    %v497 = vsel %vm496, %v492, inf
    %498 = vmin.xlane.f32.xlu0 %v497
    %v499 = vpop.xlane.xlu0 %498
    %v500 = vcvt.f32.s32 %v499
    %v501 = vcvt.f32.s32 %v495
    %v502 = vshll.u32 %v501, 16
    %v503 = vadd.s32 %v502, %v500
    %vm504 = vcmp.eq.s32.totalorder %v144, %v503
    %v505 = vsel %vm504, -inf, %v478
    %v506 = vsel %vm483, %v505, -inf
    %507 = vmax.xlane.f32.xlu0 %v506
    %v508 = vpop.xlane.xlu0 %507
    %vm509 = vcmp.ge.f32.partialorder %v505, %v508
    %v510 = vsel %vm509, %v144, 8
    %v511 = vsel %vm483, %v510, 2147483647
    %v512 = vand.u32 %v511, 65535
    %v513 = vshra.s32 %v511, 16
    %v514 = vcvt.s32.f32 %v512
    %v515 = vcvt.s32.f32 %v513
    %516 = vmin.xlane.f32.xlu0 %v515
    %v517 = vpop.xlane.xlu0 %516
    %vm518 = vcmp.eq.f32.partialorder %v515, %v517
    %v519 = vsel %vm518, %v514, inf
    %520 = vmin.xlane.f32.xlu0 %v519
    %v521 = vpop.xlane.xlu0 %520
    %v522 = vcvt.f32.s32 %v521
    %v523 = vcvt.f32.s32 %v517
    %v524 = vshll.u32 %v523, 16
    %v525 = vadd.s32 %v524, %v522
    %vm526 = vcmp.lt.s32.totalorder %v503, %v525
    %v527 = vsel %vm526, %v503, %v525
    %vm528 = vcmp.gt.s32.totalorder %v503, %v525
    %v529 = vsel %vm528, %v503, %v525
    %vm530 = vcmask 7168
    %v531 = vsel %vm530, %v527, %v529
    %533 = vset.pattern.permute.xlu0 0
    %534 = vperm.xlu0 %533, %v148
    %v535 = vpop.permute.xlu0 %534
    %537 = vset.pattern.permute.xlu0 1
    %538 = vperm.xlu0 %537, %v148
    %v539 = vpop.permute.xlu0 %538
    %v541 = vsel %vm145, %v535, %v539
    %v542 = vcvt.s32.f32 %v339
    %v543 = vcvt.s32.f32 %v341
    %v544 = vcvt.s32.f32 %v531
    %545 = vrot.lane.b32.xlu0 %v281, 4
    %v546 = vpop.permute.xlu0 %545
    %549 = vrot.lane.b32.xlu0 %v138, 6
    %v550 = vpop.permute.xlu0 %549
    %553 = vrot.lane.b32.xlu0 %v478, 16
    %v554 = vpop.permute.xlu0 %553
    %557 = vrot.lane.b32.xlu0 %v542, 22
    %v558 = vpop.permute.xlu0 %557
    %561 = vrot.lane.b32.xlu0 %v543, 26
    %v562 = vpop.permute.xlu0 %561
    %565 = vrot.lane.b32.xlu0 %v544, 34
    %v566 = vpop.permute.xlu0 %565
    %vm568 = vcmask 31744
    %v569 = vsel %vm568, %v541, %v546
    %vm570 = vcmask 64512
    %v571 = vsel %vm570, %v569, %v550
    %vm572 = vcmask 130048
    %v573 = vsel %vm572, %v571, %v284
    %vm574 = vcmask 195584
    %v575 = vsel %vm574, %v573, %v554
    %vm576 = vcmask 211968
    %v577 = vsel %vm576, %v575, %v558
    %vm578 = vcmask 244736
    %v579 = vsel %vm578, %v577, %v562
    %vm580 = vcmask 277504
    %v581 = vsel %vm580, %v579, %v566
    %vm582 = vcmask 286720
    %583 = vst.msk [vmem:[#allocation2] sm:$0x1] %vm582, %v581
    // Predicated region
    $region10: #{tpu_custom_call.1} parent=1 // pred_check
      _
    $region11: #{tpu_custom_call.1} parent=1 // pred_check_branch
      %585 = sbr.rel (0) target = $region13
    $region12: #{tpu_custom_call.1} parent=1 // pred_region
      %s587 = ssub.s32 16, 16
      %588 = vsyncadd [#allocation3], %s587
      %s590 = sshll.u32 [#allocation2], 4
      %s591 = int_to_ptr.vmem [resolvable:$true] %s590
      %593 = dma.vmem_to_hbm [thread:$0]  %s591, 16, %s2, [#allocation3]
    $region13: #{tpu_custom_call.1} parent=1 // pred_fallthru
      _
    // Predicated region
    $region14: #{tpu_custom_call.1} parent=1 // pred_check
      _
    $region15: #{tpu_custom_call.1} parent=1 // pred_check_branch
      %595 = sbr.rel (0) target = $region17
    $region16: #{tpu_custom_call.1} parent=1 // pred_region
      %596 = dma.done [#allocation3], 16
    $region17: #{tpu_custom_call.1} parent=1 // pred_fallthru
      _
    %597 = vsyncpa [#allocation3], 1

</llo_original>
